<compile_context>
chip_gen: v5e
topology: v5e:2x2
jax: 0.10.0
libtpu: 0.0.40
codegen_flags: <defaults>
</compile_context>

<pallas_src>
import jax
import jax.numpy as jnp
from jax.experimental import pallas as pl
from jax.experimental.pallas import tpu as pltpu


def se_kernel(x_ref, w1_ref, b1_ref, w2_ref, b2_ref, o_ref):
    # x_ref / o_ref: (TB, HW, C) channels-last slab (C on the lane axis).
    # w1: (C, Cr) pre-scaled by 1/HW   b1: (1, Cr)   w2: (Cr, C)   b2: (1, C)
    x = x_ref[...]                                   # native dtype, no full cast

    # ---- squeeze: sum over the spatial (sublane) axis, f32 accumulation ----
    # (the 1/HW of the mean is folded into w1 by the wrapper)
    pooled = jnp.sum(x, axis=1, dtype=jnp.float32)   # (TB, C)

    # ---- excitation: tiny FC -> ReLU -> FC -> sigmoid (row orientation) ----
    h = jnp.dot(pooled, w1_ref[...], preferred_element_type=jnp.float32)  # (TB, Cr)
    h = jnp.maximum(h + b1_ref[...], 0.0)
    s = jnp.dot(h, w2_ref[...], preferred_element_type=jnp.float32)       # (TB, C)
    s = jax.nn.sigmoid(s + b2_ref[...])

    # ---- scale: per-(batch, channel) gate broadcast along sublanes ----
    o_ref[...] = (x * s[:, None, :].astype(x.dtype)).astype(o_ref.dtype)


def _choose_tb_and_vmem(B, HW, C, dsize):
    """Pick the batch-block size TB and a generation-safe VMEM budget."""
    per_batch = HW * C * dsize                       # bytes of one batch slab
    budget = 48 * 1024 * 1024                        # fits v7x 64 MiB with headroom
    # Peak ~= 2 buffers * (in + out) * slab + weights; keep ~25% headroom.
    max_slab = (budget * 3 // 4) // 4
    tb = max(1, min(B, max_slab // max(per_batch, 1)))
    # Prefer a TB that divides B so every grid step is a full block.
    while B % tb:
        tb -= 1
    # v7x has 2 TCs: if batch-blocking collapsed the grid to a single step but
    # B can split into >= 2 still-large (>= 0.5 MiB) slabs, split the work.
    if tb == B and B > 1 and per_batch * (B // 2) >= (1 << 19):
        tb = B // 2
        while B % tb:
            tb -= 1
    vmem = min(budget, max(16 * 1024 * 1024, 4 * tb * per_batch + (1 << 20)))
    return tb, vmem


def se_layer(x_nchw, w1, b1, w2, b2):
    """x: (B, C, H, W); w1: (C, Cr); b1: (Cr,); w2: (Cr, C); b2: (C,)."""
    B, C, H, W = x_nchw.shape
    HW = H * W
    Cr = w1.shape[1]
    dsize = jnp.dtype(x_nchw.dtype).itemsize

    # Channels-last so C is the lane axis (lane-dense for real SE channel counts).
    x_flat = x_nchw.reshape(B, C, HW).transpose(0, 2, 1)      # (B, HW, C)

    # Fold the 1/HW mean into W1 (exact: mean @ W1 == sum @ (W1/HW)); biases as rows.
    w1s = (w1.astype(jnp.float32) / HW)                        # (C, Cr)
    b1r = b1.reshape(1, Cr).astype(jnp.float32)                # (1, Cr)
    w2f = w2.astype(jnp.float32)                               # (Cr, C)
    b2r = b2.reshape(1, C).astype(jnp.float32)                 # (1, C)

    TB, vmem_bytes = _choose_tb_and_vmem(B, HW, C, dsize)
    grid = (B // TB,)

    cost = pl.CostEstimate(
        flops=2 * B * C * HW + 4 * B * C * Cr,                 # pool + scale + 2 FCs
        transcendentals=B * C,                                 # sigmoid
        bytes_accessed=2 * B * C * HW * dsize + (2 * C * Cr + C + Cr) * 4,
    )

    out_flat = pl.pallas_call(
        se_kernel,
        out_shape=jax.ShapeDtypeStruct((B, HW, C), x_nchw.dtype),
        grid_spec=pltpu.PrefetchScalarGridSpec(
            num_scalar_prefetch=0,
            grid=grid,
            in_specs=[
                # One batch block of TB elements per grid step.
                pl.BlockSpec((TB, HW, C), lambda b: (b, 0, 0)),
                # Weights/biases are tiny and block-invariant (fetched once).
                pl.BlockSpec((C, Cr), lambda b: (0, 0)),
                pl.BlockSpec((1, Cr), lambda b: (0, 0)),
                pl.BlockSpec((Cr, C), lambda b: (0, 0)),
                pl.BlockSpec((1, C), lambda b: (0, 0)),
            ],
            out_specs=pl.BlockSpec((TB, HW, C), lambda b: (b, 0, 0)),
        ),
        compiler_params=pltpu.CompilerParams(
            # Batch blocks are independent -> shard across TCs on v7x,
            # plain pipelined loop on v5e/v6e.
            dimension_semantics=("parallel",),
            vmem_limit_bytes=vmem_bytes,
        ),
        cost_estimate=cost,
    )(x_flat, w1s, b1r, w2f, b2r)

    return out_flat.transpose(0, 2, 1).reshape(B, C, H, W)


def se_layer_ref(x, w1, b1, w2, b2):
    # pure-JAX reference for correctness check
    y = jnp.mean(x, axis=(2, 3))                 # (B, C)
    h = jnp.maximum(y @ w1 + b1, 0.0)
    s = jax.nn.sigmoid(h @ w2 + b2)
    return x * s[:, :, None, None]


if __name__ == "__main__":
    B, C, H, W = 2, 16, 16, 16
    reduction = 8
    Cr = C // reduction

    key = jax.random.PRNGKey(0)
    kx, k1, kb1, k2, kb2 = jax.random.split(key, 5)

    x = jax.random.normal(kx, (B, C, H, W), dtype=jnp.float32)
    # Linear(channel -> channel//reduction) stored here as (in, out); and back.
    w1 = jax.random.normal(k1, (C, Cr), dtype=jnp.float32) * 0.1
    b1 = jax.random.normal(kb1, (Cr,), dtype=jnp.float32) * 0.1
    w2 = jax.random.normal(k2, (Cr, C), dtype=jnp.float32) * 0.1
    b2 = jax.random.normal(kb2, (C,), dtype=jnp.float32) * 0.1

    out = se_layer(x, w1, b1, w2, b2)
    jax.block_until_ready(out)

    ref = se_layer_ref(x, w1, b1, w2, b2)
    assert out.shape == (B, C, H, W)
    assert jnp.allclose(out, ref, atol=1e-5, rtol=1e-5), "mismatch vs reference"

    print("KERNEL_OK")
</pallas_src>

<mosaic_0001>
module attributes {stable_mosaic.version = 11 : i64} {
  func.func @se_kernel(%arg0: i32, %arg1: memref<2x256x16xf32, #tpu.memory_space<vmem>>, %arg2: memref<16x2xf32, #tpu.memory_space<vmem>>, %arg3: memref<1x2xf32, #tpu.memory_space<vmem>>, %arg4: memref<2x16xf32, #tpu.memory_space<vmem>>, %arg5: memref<1x16xf32, #tpu.memory_space<vmem>>, %arg6: memref<2x256x16xf32, #tpu.memory_space<vmem>>) attributes {dimension_semantics = [#tpu.dimension_semantics<parallel>], iteration_bounds = array<i64: 1>, scalar_prefetch = 0 : i64, scratch_operands = 0 : i64, tpu.core_type = #tpu.core_type<tc>, window_params = [{transform_indices = @transform_0, window_bounds = array<i64: 2, 256, 16>}, {pipeline_mode = #tpu.pipeline_mode<synchronous>, transform_indices = @transform_1, window_bounds = array<i64: 16, 2>}, {pipeline_mode = #tpu.pipeline_mode<synchronous>, transform_indices = @transform_2, window_bounds = array<i64: 1, 2>}, {pipeline_mode = #tpu.pipeline_mode<synchronous>, transform_indices = @transform_3, window_bounds = array<i64: 2, 16>}, {pipeline_mode = #tpu.pipeline_mode<synchronous>, transform_indices = @transform_4, window_bounds = array<i64: 1, 16>}, {transform_indices = @transform_5, window_bounds = array<i64: 2, 256, 16>}]} {
    %c0 = arith.constant 0 : index
    %c0_0 = arith.constant 0 : index
    %c0_1 = arith.constant 0 : index
    %0 = vector.load %arg1[%c0, %c0_0, %c0_1] : memref<2x256x16xf32, #tpu.memory_space<vmem>>, vector<2x256x16xf32>
    %cst = arith.constant dense<0.000000e+00> : vector<2x16xf32>
    %1 = vector.multi_reduction <add>, %0, %cst [1] : vector<2x256x16xf32> to vector<2x16xf32>
    %c0_2 = arith.constant 0 : index
    %c0_3 = arith.constant 0 : index
    %2 = vector.load %arg2[%c0_2, %c0_3] : memref<16x2xf32, #tpu.memory_space<vmem>>, vector<16x2xf32>
    %cst_4 = arith.constant dense<0.000000e+00> : vector<2x2xf32>
    %3 = tpu.matmul %1, %2, %cst_4 {dimension_numbers = #tpu.dot_dimension_numbers<[1], [0], [0], [1], [0, 0, 1, 1], [], []>} : vector<2x16xf32>, vector<16x2xf32>, vector<2x2xf32> -> vector<2x2xf32>
    %c0_5 = arith.constant 0 : index
    %c0_6 = arith.constant 0 : index
    %4 = vector.load %arg3[%c0_5, %c0_6] : memref<1x2xf32, #tpu.memory_space<vmem>>, vector<1x2xf32>
    %5 = vector.broadcast %4 : vector<1x2xf32> to vector<2x2xf32>
    %6 = arith.addf %3, %5 : vector<2x2xf32>
    %cst_7 = arith.constant 0.000000e+00 : f32
    %7 = vector.broadcast %cst_7 : f32 to vector<2x2xf32>
    %8 = arith.maximumf %6, %7 : vector<2x2xf32>
    %c0_8 = arith.constant 0 : index
    %c0_9 = arith.constant 0 : index
    %9 = vector.load %arg4[%c0_8, %c0_9] : memref<2x16xf32, #tpu.memory_space<vmem>>, vector<2x16xf32>
    %cst_10 = arith.constant dense<0.000000e+00> : vector<2x16xf32>
    %10 = tpu.matmul %8, %9, %cst_10 {dimension_numbers = #tpu.dot_dimension_numbers<[1], [0], [0], [1], [0, 0, 1, 1], [], []>} : vector<2x2xf32>, vector<2x16xf32>, vector<2x16xf32> -> vector<2x16xf32>
    %c0_11 = arith.constant 0 : index
    %c0_12 = arith.constant 0 : index
    %11 = vector.load %arg5[%c0_11, %c0_12] : memref<1x16xf32, #tpu.memory_space<vmem>>, vector<1x16xf32>
    %12 = vector.broadcast %11 : vector<1x16xf32> to vector<2x16xf32>
    %13 = arith.addf %10, %12 : vector<2x16xf32>
    %14 = arith.negf %13 : vector<2x16xf32>
    %15 = math.exp %14 : vector<2x16xf32>
    %cst_13 = arith.constant 1.000000e+00 : f32
    %16 = vector.broadcast %cst_13 : f32 to vector<2x16xf32>
    %17 = arith.addf %16, %15 : vector<2x16xf32>
    %18 = arith.divf %16, %17 : vector<2x16xf32>
    %19 = vector.shape_cast %18 : vector<2x16xf32> to vector<2x1x16xf32>
    %20 = vector.broadcast %19 : vector<2x1x16xf32> to vector<2x256x16xf32>
    %21 = arith.mulf %0, %20 : vector<2x256x16xf32>
    %c0_14 = arith.constant 0 : index
    %c0_15 = arith.constant 0 : index
    %c0_16 = arith.constant 0 : index
    %22 = vector.load %arg6[%c0_14, %c0_15, %c0_16] : memref<2x256x16xf32, #tpu.memory_space<vmem>>, vector<2x256x16xf32>
    tpu.vector_store %arg6[%c0_14, %c0_15, %c0_16], %21 {strides = array<i32>} : memref<2x256x16xf32, #tpu.memory_space<vmem>>, vector<2x256x16xf32>,
    return
  }
  func.func @transform_0(%arg0: i32) -> (i32, i32, i32) {
    %c0_i32 = arith.constant 0 : i32
    %c0_i32_0 = arith.constant 0 : i32
    %c0_i32_1 = arith.constant 0 : i32
    return %arg0, %c0_i32, %c0_i32_0 : i32, i32, i32
  }
  func.func @transform_1(%arg0: i32) -> (i32, i32) {
    %c0_i32 = arith.constant 0 : i32
    %c0_i32_0 = arith.constant 0 : i32
    %c0_i32_1 = arith.constant 0 : i32
    return %c0_i32, %c0_i32_0 : i32, i32
  }
  func.func @transform_2(%arg0: i32) -> (i32, i32) {
    %c0_i32 = arith.constant 0 : i32
    %c0_i32_0 = arith.constant 0 : i32
    %c0_i32_1 = arith.constant 0 : i32
    return %c0_i32, %c0_i32_0 : i32, i32
  }
  func.func @transform_3(%arg0: i32) -> (i32, i32) {
    %c0_i32 = arith.constant 0 : i32
    %c0_i32_0 = arith.constant 0 : i32
    %c0_i32_1 = arith.constant 0 : i32
    return %c0_i32, %c0_i32_0 : i32, i32
  }
  func.func @transform_4(%arg0: i32) -> (i32, i32) {
    %c0_i32 = arith.constant 0 : i32
    %c0_i32_0 = arith.constant 0 : i32
    %c0_i32_1 = arith.constant 0 : i32
    return %c0_i32, %c0_i32_0 : i32, i32
  }
  func.func @transform_5(%arg0: i32) -> (i32, i32, i32) {
    %c0_i32 = arith.constant 0 : i32
    %c0_i32_0 = arith.constant 0 : i32
    %c0_i32_1 = arith.constant 0 : i32
    return %arg0, %c0_i32, %c0_i32_0 : i32, i32, i32
  }
}

</mosaic_0001>

<llo_original>
// kernel: tpu_custom_call.1
$region0: #{tpu_custom_call.1}
  #allocation0 [shape = 'u32[]', space=smem, size = 0x4, offset = 0x4, fixed_abs, tag = 'smem constant byte address 0x4 - core index']
  #allocation1 [shape = 'u32[72,128]{1,0:T(1,128)}', space=vmem, size = 0x9000, scoped, tag = 'internal scratch']
  %s0 = inlined_call_operand.vmem [shape: f32[2,256,16], index: 0, kind: input, shape index: {}]
  %s1 = inlined_call_operand.vmem [shape: f32[16,2], index: 1, kind: input, shape index: {}]
  %s2 = inlined_call_operand.vmem [shape: f32[1,2], index: 2, kind: input, shape index: {}]
  %s3 = inlined_call_operand.vmem [shape: f32[2,16], index: 3, kind: input, shape index: {}]
  %s4 = inlined_call_operand.vmem [shape: f32[1,16], index: 4, kind: input, shape index: {}]
  %s5 = inlined_call_operand.vmem [shape: f32[2,256,16], index: 5, kind: output, shape index: {}]
  %s6 = sld [smem:[#allocation0]]
  $region30: #{tpu_custom_call.1} parent=0
    _
  %s8 = ssub.s32 1, %s6
  %s9 = scalar_select 0, %s8, %s6
  // Predicated region
  $region2: #{tpu_custom_call.1} parent=0 // pred_check
    _
  $region3: #{tpu_custom_call.1} parent=0 // pred_check_branch
    %11 = sbr.rel (0) target = $region5
  $region4: #{tpu_custom_call.1} parent=0 // pred_region
    _
  $region5: #{tpu_custom_call.1} parent=0 // pred_fallthru
    _
  // Predicated region
  $region6: #{tpu_custom_call.1} parent=0 // pred_check
    _
  $region7: #{tpu_custom_call.1} parent=0 // pred_check_branch
    %13 = sbr.rel (0) target = $region9
  $region8: #{tpu_custom_call.1} parent=0 // pred_region
    _
  $region9: #{tpu_custom_call.1} parent=0 // pred_fallthru
    _
  // Predicated region
  $region10: #{tpu_custom_call.1} parent=0 // pred_check
    _
  $region11: #{tpu_custom_call.1} parent=0 // pred_check_branch
    %15 = sbr.rel (0) target = $region13
  $region12: #{tpu_custom_call.1} parent=0 // pred_region
    _
  $region13: #{tpu_custom_call.1} parent=0 // pred_fallthru
    _
  // Predicated region
  $region14: #{tpu_custom_call.1} parent=0 // pred_check
    _
  $region15: #{tpu_custom_call.1} parent=0 // pred_check_branch
    %17 = sbr.rel (0) target = $region17
  $region16: #{tpu_custom_call.1} parent=0 // pred_region
    _
  $region17: #{tpu_custom_call.1} parent=0 // pred_fallthru
    _
  // Predicated region
  $region18: #{tpu_custom_call.1} parent=0 // pred_check
    _
  $region19: #{tpu_custom_call.1} parent=0 // pred_check_branch
    %19 = sbr.rel (0) target = $region21
  $region20: #{tpu_custom_call.1} parent=0 // pred_region
    _
  $region21: #{tpu_custom_call.1} parent=0 // pred_fallthru
    _
  %v20 = vld [vmem:[%s0] sm:$0xff]
  %v21 = vld [vmem:[%s0 + $0x8] sm:$0xff]
  %v22 = vld [vmem:[%s0 + $0x10] sm:$0xff]
  %v23 = vld [vmem:[%s0 + $0x18] sm:$0xff]
  %v24 = vld [vmem:[%s0 + $0x20] sm:$0xff]
  %v25 = vld [vmem:[%s0 + $0x28] sm:$0xff]
  %v26 = vld [vmem:[%s0 + $0x30] sm:$0xff]
  %v27 = vld [vmem:[%s0 + $0x38] sm:$0xff]
  %v28 = vld [vmem:[%s0 + $0x40] sm:$0xff]
  %v29 = vld [vmem:[%s0 + $0x48] sm:$0xff]
  %v30 = vld [vmem:[%s0 + $0x50] sm:$0xff]
  %v31 = vld [vmem:[%s0 + $0x58] sm:$0xff]
  %v32 = vld [vmem:[%s0 + $0x60] sm:$0xff]
  %v33 = vld [vmem:[%s0 + $0x68] sm:$0xff]
  %v34 = vld [vmem:[%s0 + $0x70] sm:$0xff]
  %v35 = vld [vmem:[%s0 + $0x78] sm:$0xff]
  %v36 = vld [vmem:[%s0 + $0x80] sm:$0xff]
  %v37 = vld [vmem:[%s0 + $0x88] sm:$0xff]
  %v38 = vld [vmem:[%s0 + $0x90] sm:$0xff]
  %v39 = vld [vmem:[%s0 + $0x98] sm:$0xff]
  %v40 = vld [vmem:[%s0 + $0xa0] sm:$0xff]
  %v41 = vld [vmem:[%s0 + $0xa8] sm:$0xff]
  %v42 = vld [vmem:[%s0 + $0xb0] sm:$0xff]
  %v43 = vld [vmem:[%s0 + $0xb8] sm:$0xff]
  %v44 = vld [vmem:[%s0 + $0xc0] sm:$0xff]
  %v45 = vld [vmem:[%s0 + $0xc8] sm:$0xff]
  %v46 = vld [vmem:[%s0 + $0xd0] sm:$0xff]
  %v47 = vld [vmem:[%s0 + $0xd8] sm:$0xff]
  %v48 = vld [vmem:[%s0 + $0xe0] sm:$0xff]
  %v49 = vld [vmem:[%s0 + $0xe8] sm:$0xff]
  %v50 = vld [vmem:[%s0 + $0xf0] sm:$0xff]
  %v51 = vld [vmem:[%s0 + $0xf8] sm:$0xff]
  %v52 = vld [vmem:[%s0 + $0x100] sm:$0xff]
  %v53 = vld [vmem:[%s0 + $0x108] sm:$0xff]
  %v54 = vld [vmem:[%s0 + $0x110] sm:$0xff]
  %v55 = vld [vmem:[%s0 + $0x118] sm:$0xff]
  %v56 = vld [vmem:[%s0 + $0x120] sm:$0xff]
  %v57 = vld [vmem:[%s0 + $0x128] sm:$0xff]
  %v58 = vld [vmem:[%s0 + $0x130] sm:$0xff]
  %v59 = vld [vmem:[%s0 + $0x138] sm:$0xff]
  %v60 = vld [vmem:[%s0 + $0x140] sm:$0xff]
  %v61 = vld [vmem:[%s0 + $0x148] sm:$0xff]
  %v62 = vld [vmem:[%s0 + $0x150] sm:$0xff]
  %v63 = vld [vmem:[%s0 + $0x158] sm:$0xff]
  %v64 = vld [vmem:[%s0 + $0x160] sm:$0xff]
  %v65 = vld [vmem:[%s0 + $0x168] sm:$0xff]
  %v66 = vld [vmem:[%s0 + $0x170] sm:$0xff]
  %v67 = vld [vmem:[%s0 + $0x178] sm:$0xff]
  %v68 = vld [vmem:[%s0 + $0x180] sm:$0xff]
  %v69 = vld [vmem:[%s0 + $0x188] sm:$0xff]
  %v70 = vld [vmem:[%s0 + $0x190] sm:$0xff]
  %v71 = vld [vmem:[%s0 + $0x198] sm:$0xff]
  %v72 = vld [vmem:[%s0 + $0x1a0] sm:$0xff]
  %v73 = vld [vmem:[%s0 + $0x1a8] sm:$0xff]
  %v74 = vld [vmem:[%s0 + $0x1b0] sm:$0xff]
  %v75 = vld [vmem:[%s0 + $0x1b8] sm:$0xff]
  %v76 = vld [vmem:[%s0 + $0x1c0] sm:$0xff]
  %v77 = vld [vmem:[%s0 + $0x1c8] sm:$0xff]
  %v78 = vld [vmem:[%s0 + $0x1d0] sm:$0xff]
  %v79 = vld [vmem:[%s0 + $0x1d8] sm:$0xff]
  %v80 = vld [vmem:[%s0 + $0x1e0] sm:$0xff]
  %v81 = vld [vmem:[%s0 + $0x1e8] sm:$0xff]
  %v82 = vld [vmem:[%s0 + $0x1f0] sm:$0xff]
  %v83 = vld [vmem:[%s0 + $0x1f8] sm:$0xff]
  %vm84 = vcmask 130048
  %v85 = vsel %vm84, %v20, 0.0
  %v86 = vsel %vm84, %v21, 0.0
  %v87 = vadd.f32 %v85, %v86
  %v88 = vsel %vm84, %v22, 0.0
  %v89 = vadd.f32 %v87, %v88
  %v90 = vsel %vm84, %v23, 0.0
  %v91 = vadd.f32 %v89, %v90
  %v92 = vsel %vm84, %v24, 0.0
  %v93 = vadd.f32 %v91, %v92
  %v94 = vsel %vm84, %v25, 0.0
  %v95 = vadd.f32 %v93, %v94
  %v96 = vsel %vm84, %v26, 0.0
  %v97 = vadd.f32 %v95, %v96
  %v98 = vsel %vm84, %v27, 0.0
  %v99 = vadd.f32 %v97, %v98
  %v100 = vsel %vm84, %v28, 0.0
  %v101 = vadd.f32 %v99, %v100
  %v102 = vsel %vm84, %v29, 0.0
  %v103 = vadd.f32 %v101, %v102
  %v104 = vsel %vm84, %v30, 0.0
  %v105 = vadd.f32 %v103, %v104
  %v106 = vsel %vm84, %v31, 0.0
  %v107 = vadd.f32 %v105, %v106
  %v108 = vsel %vm84, %v32, 0.0
  %v109 = vadd.f32 %v107, %v108
  %v110 = vsel %vm84, %v33, 0.0
  %v111 = vadd.f32 %v109, %v110
  %v112 = vsel %vm84, %v34, 0.0
  %v113 = vadd.f32 %v111, %v112
  %v114 = vsel %vm84, %v35, 0.0
  %v115 = vadd.f32 %v113, %v114
  %v116 = vsel %vm84, %v36, 0.0
  %v117 = vadd.f32 %v115, %v116
  %v118 = vsel %vm84, %v37, 0.0
  %v119 = vadd.f32 %v117, %v118
  %v120 = vsel %vm84, %v38, 0.0
  %v121 = vadd.f32 %v119, %v120
  %v122 = vsel %vm84, %v39, 0.0
  %v123 = vadd.f32 %v121, %v122
  %v124 = vsel %vm84, %v40, 0.0
  %v125 = vadd.f32 %v123, %v124
  %v126 = vsel %vm84, %v41, 0.0
  %v127 = vadd.f32 %v125, %v126
  %v128 = vsel %vm84, %v42, 0.0
  %v129 = vadd.f32 %v127, %v128
  %v130 = vsel %vm84, %v43, 0.0
  %v131 = vadd.f32 %v129, %v130
  %v132 = vsel %vm84, %v44, 0.0
  %v133 = vadd.f32 %v131, %v132
  %v134 = vsel %vm84, %v45, 0.0
  %v135 = vadd.f32 %v133, %v134
  %v136 = vsel %vm84, %v46, 0.0
  %v137 = vadd.f32 %v135, %v136
  %v138 = vsel %vm84, %v47, 0.0
  %v139 = vadd.f32 %v137, %v138
  %v140 = vsel %vm84, %v48, 0.0
  %v141 = vadd.f32 %v139, %v140
  %v142 = vsel %vm84, %v49, 0.0
  %v143 = vadd.f32 %v141, %v142
  %v144 = vsel %vm84, %v50, 0.0
  %v145 = vadd.f32 %v143, %v144
  %v146 = vsel %vm84, %v51, 0.0
  %v147 = vadd.f32 %v145, %v146
  %v148 = vrot.slane %v147, 4
  %v149 = vadd.f32 %v147, %v148
  %v150 = vrot.slane %v149, 2
  %v151 = vadd.f32 %v149, %v150
  %v152 = vrot.slane %v151, 1
  %v153 = vadd.f32 %v151, %v152
  %v154 = vsel %vm84, %v52, 0.0
  %v155 = vsel %vm84, %v53, 0.0
  %v156 = vadd.f32 %v154, %v155
  %v157 = vsel %vm84, %v54, 0.0
  %v158 = vadd.f32 %v156, %v157
  %v159 = vsel %vm84, %v55, 0.0
  %v160 = vadd.f32 %v158, %v159
  %v161 = vsel %vm84, %v56, 0.0
  %v162 = vadd.f32 %v160, %v161
  %v163 = vsel %vm84, %v57, 0.0
  %v164 = vadd.f32 %v162, %v163
  %v165 = vsel %vm84, %v58, 0.0
  %v166 = vadd.f32 %v164, %v165
  %v167 = vsel %vm84, %v59, 0.0
  %v168 = vadd.f32 %v166, %v167
  %v169 = vsel %vm84, %v60, 0.0
  %v170 = vadd.f32 %v168, %v169
  %v171 = vsel %vm84, %v61, 0.0
  %v172 = vadd.f32 %v170, %v171
  %v173 = vsel %vm84, %v62, 0.0
  %v174 = vadd.f32 %v172, %v173
  %v175 = vsel %vm84, %v63, 0.0
  %v176 = vadd.f32 %v174, %v175
  %v177 = vsel %vm84, %v64, 0.0
  %v178 = vadd.f32 %v176, %v177
  %v179 = vsel %vm84, %v65, 0.0
  %v180 = vadd.f32 %v178, %v179
  %v181 = vsel %vm84, %v66, 0.0
  %v182 = vadd.f32 %v180, %v181
  %v183 = vsel %vm84, %v67, 0.0
  %v184 = vadd.f32 %v182, %v183
  %v185 = vsel %vm84, %v68, 0.0
  %v186 = vadd.f32 %v184, %v185
  %v187 = vsel %vm84, %v69, 0.0
  %v188 = vadd.f32 %v186, %v187
  %v189 = vsel %vm84, %v70, 0.0
  %v190 = vadd.f32 %v188, %v189
  %v191 = vsel %vm84, %v71, 0.0
  %v192 = vadd.f32 %v190, %v191
  %v193 = vsel %vm84, %v72, 0.0
  %v194 = vadd.f32 %v192, %v193
  %v195 = vsel %vm84, %v73, 0.0
  %v196 = vadd.f32 %v194, %v195
  %v197 = vsel %vm84, %v74, 0.0
  %v198 = vadd.f32 %v196, %v197
  %v199 = vsel %vm84, %v75, 0.0
  %v200 = vadd.f32 %v198, %v199
  %v201 = vsel %vm84, %v76, 0.0
  %v202 = vadd.f32 %v200, %v201
  %v203 = vsel %vm84, %v77, 0.0
  %v204 = vadd.f32 %v202, %v203
  %v205 = vsel %vm84, %v78, 0.0
  %v206 = vadd.f32 %v204, %v205
  %v207 = vsel %vm84, %v79, 0.0
  %v208 = vadd.f32 %v206, %v207
  %v209 = vsel %vm84, %v80, 0.0
  %v210 = vadd.f32 %v208, %v209
  %v211 = vsel %vm84, %v81, 0.0
  %v212 = vadd.f32 %v210, %v211
  %v213 = vsel %vm84, %v82, 0.0
  %v214 = vadd.f32 %v212, %v213
  %v215 = vsel %vm84, %v83, 0.0
  %v216 = vadd.f32 %v214, %v215
  %v217 = vrot.slane %v216, 4
  %v218 = vadd.f32 %v216, %v217
  %v219 = vrot.slane %v218, 2
  %v220 = vadd.f32 %v218, %v219
  %v221 = vrot.slane %v220, 1
  %v222 = vadd.f32 %v220, %v221
  %v223 = vld [vmem:[%s1] sm:$0xff]
  %v224 = vld [vmem:[%s1 + $0x8] sm:$0xff]
  %v225 = vld [vmem:[%s2] sm:$0x1]
  %v227 = vperm.slane %v225, 0
  %vm231 = vcmask 1041409
  %v232 = vsel %vm231, %v222, %v153
  %v233 = vsel %vm84, %v232, 0
  %235 = vmatpush.msra.mxu0 0.0
  %236 = vmatpush.msra.mxu0 0.0
  %237 = vmatpush.msra.mxu0 0.0
  %238 = vmatpush.msra.mxu0 0.0
  %239 = vmatpush.msra.mxu0 0.0
  %240 = vmatpush.msra.mxu0 0.0
  %241 = vmatpush.msra.mxu0 0.0
  %242 = vmatpush.msra.mxu0 0.0
  %243 = vmatpush.msra.mxu0 0.0
  %244 = vmatpush.msra.mxu0 0.0
  %245 = vmatpush.msra.mxu0 0.0
  %246 = vmatpush.msra.mxu0 0.0
  %247 = vmatpush.msra.mxu0 0.0
  %248 = vmatpush.msra.mxu0 0.0
  %249 = vmatpush.msra.mxu0 %v224
  %250 = vmatpush.msra.mxu0 %v223
  %251 = vmatmul.f32.gmra.mxu0 %v233
  %v252 = vpop.f32.mrf.mxu0
  %v253 = vadd.f32 %v227, %v252
  %254 = vdwg.mxu0
  %v255 = vmax.f32 %v253, 0.0
  %v256 = vld [vmem:[%s3] sm:$0x3]
  %v257 = vld [vmem:[%s4] sm:$0x1]
  %v259 = vperm.slane %v257, 0
  %vm261 = vcmask 15360
  %v263 = vsel %vm261, %v255, 0
  %vm265 = vcmask 1041408
  %v267 = vsel %vm265, %v256, 0
  %269 = vmatpush.msra.mxu0 0.0
  %270 = vmatpush.msra.mxu0 0.0
  %271 = vmatpush.msra.mxu0 0.0
  %272 = vmatpush.msra.mxu0 0.0
  %273 = vmatpush.msra.mxu0 0.0
  %274 = vmatpush.msra.mxu0 0.0
  %275 = vmatpush.msra.mxu0 0.0
  %276 = vmatpush.msra.mxu0 0.0
  %277 = vmatpush.msra.mxu0 0.0
  %278 = vmatpush.msra.mxu0 0.0
  %279 = vmatpush.msra.mxu0 0.0
  %280 = vmatpush.msra.mxu0 0.0
  %281 = vmatpush.msra.mxu0 0.0
  %282 = vmatpush.msra.mxu0 0.0
  %283 = vmatpush.msra.mxu0 0.0
  %284 = vmatpush.msra.mxu0 %v267
  %285 = vmatmul.f32.gmra.mxu0 %v263
  %v286 = vpop.f32.mrf.mxu0
  %v287 = vadd.f32 %v259, %v286
  %288 = vdwg.mxu0
  %v289 = vxor.u32 %v287, 2147483648
  %v290 = vmul.f32 %v289, 1.442695
  %v291 = vpow.pop %v290
  %v292 = vadd.f32 %v291, 1.0
  %v293 = vrcp.pop %v292
  %v294 = vmul.f32 %v292, %v293
  %v295 = vsub.f32 1.0, %v294
  %v296 = vmul.f32 %v293, %v295
  %v297 = vadd.f32 %v293, %v296
  %vm298 = vweird.f32 %v292
  %vm299 = vweird.f32 %v293
  %vm300 = vmor %vm298, %vm299
  %v301 = vsel %vm300, %v293, %v297
  %v302 = vand.u32 2147483647, %v292
  %vm303 = vcmp.eq.f32.partialorder %v302, 8.507059e+37
  %v304 = vand.u32 %v292, 2147483648
  %v305 = vor.u32 1.1754944e-38, %v304
  %v306 = vsel %vm303, %v305, %v301
  %v307 = vmul.f32 1.0, %v306
  %v309 = vrot.slane %v307, 1
  %v310 = vperm.slane %v307, 0
  %v311 = vperm.slane %v309, 0
  %v314 = vmul.f32 %v20, %v310
  %v315 = vmul.f32 %v21, %v310
  %v316 = vmul.f32 %v22, %v310
  %v317 = vmul.f32 %v23, %v310
  %v318 = vmul.f32 %v24, %v310
  %v319 = vmul.f32 %v25, %v310
  %v320 = vmul.f32 %v26, %v310
  %v321 = vmul.f32 %v27, %v310
  %v322 = vmul.f32 %v28, %v310
  %v323 = vmul.f32 %v29, %v310
  %v324 = vmul.f32 %v30, %v310
  %v325 = vmul.f32 %v31, %v310
  %v326 = vmul.f32 %v32, %v310
  %v327 = vmul.f32 %v33, %v310
  %v328 = vmul.f32 %v34, %v310
  %v329 = vmul.f32 %v35, %v310
  %v330 = vmul.f32 %v36, %v310
  %v331 = vmul.f32 %v37, %v310
  %v332 = vmul.f32 %v38, %v310
  %v333 = vmul.f32 %v39, %v310
  %v334 = vmul.f32 %v40, %v310
  %v335 = vmul.f32 %v41, %v310
  %v336 = vmul.f32 %v42, %v310
  %v337 = vmul.f32 %v43, %v310
  %v338 = vmul.f32 %v44, %v310
  %v339 = vmul.f32 %v45, %v310
  %v340 = vmul.f32 %v46, %v310
  %v341 = vmul.f32 %v47, %v310
  %v342 = vmul.f32 %v48, %v310
  %v343 = vmul.f32 %v49, %v310
  %v344 = vmul.f32 %v50, %v310
  %v345 = vmul.f32 %v51, %v310
  %v346 = vmul.f32 %v52, %v311
  %v347 = vmul.f32 %v53, %v311
  %v348 = vmul.f32 %v54, %v311
  %v349 = vmul.f32 %v55, %v311
  %v350 = vmul.f32 %v56, %v311
  %v351 = vmul.f32 %v57, %v311
  %v352 = vmul.f32 %v58, %v311
  %v353 = vmul.f32 %v59, %v311
  %v354 = vmul.f32 %v60, %v311
  %v355 = vmul.f32 %v61, %v311
  %v356 = vmul.f32 %v62, %v311
  %v357 = vmul.f32 %v63, %v311
  %v358 = vmul.f32 %v64, %v311
  %v359 = vmul.f32 %v65, %v311
  %v360 = vmul.f32 %v66, %v311
  %v361 = vmul.f32 %v67, %v311
  %v362 = vmul.f32 %v68, %v311
  %v363 = vmul.f32 %v69, %v311
  %v364 = vmul.f32 %v70, %v311
  %v365 = vmul.f32 %v71, %v311
  %v366 = vmul.f32 %v72, %v311
  %v367 = vmul.f32 %v73, %v311
  %v368 = vmul.f32 %v74, %v311
  %v369 = vmul.f32 %v75, %v311
  %v370 = vmul.f32 %v76, %v311
  %v371 = vmul.f32 %v77, %v311
  %v372 = vmul.f32 %v78, %v311
  %v373 = vmul.f32 %v79, %v311
  %v374 = vmul.f32 %v80, %v311
  %v375 = vmul.f32 %v81, %v311
  %v376 = vmul.f32 %v82, %v311
  %v377 = vmul.f32 %v83, %v311
  %378 = vst.msk [vmem:[%s5] sm:$0xff] %vm84, %v314
  %379 = vst.msk [vmem:[%s5 + $0x8] sm:$0xff] %vm84, %v315
  %380 = vst.msk [vmem:[%s5 + $0x10] sm:$0xff] %vm84, %v316
  %381 = vst.msk [vmem:[%s5 + $0x18] sm:$0xff] %vm84, %v317
  %382 = vst.msk [vmem:[%s5 + $0x20] sm:$0xff] %vm84, %v318
  %383 = vst.msk [vmem:[%s5 + $0x28] sm:$0xff] %vm84, %v319
  %384 = vst.msk [vmem:[%s5 + $0x30] sm:$0xff] %vm84, %v320
  %385 = vst.msk [vmem:[%s5 + $0x38] sm:$0xff] %vm84, %v321
  %386 = vst.msk [vmem:[%s5 + $0x40] sm:$0xff] %vm84, %v322
  %387 = vst.msk [vmem:[%s5 + $0x48] sm:$0xff] %vm84, %v323
  %388 = vst.msk [vmem:[%s5 + $0x50] sm:$0xff] %vm84, %v324
  %389 = vst.msk [vmem:[%s5 + $0x58] sm:$0xff] %vm84, %v325
  %390 = vst.msk [vmem:[%s5 + $0x60] sm:$0xff] %vm84, %v326
  %391 = vst.msk [vmem:[%s5 + $0x68] sm:$0xff] %vm84, %v327
  %392 = vst.msk [vmem:[%s5 + $0x70] sm:$0xff] %vm84, %v328
  %393 = vst.msk [vmem:[%s5 + $0x78] sm:$0xff] %vm84, %v329
  %394 = vst.msk [vmem:[%s5 + $0x80] sm:$0xff] %vm84, %v330
  %395 = vst.msk [vmem:[%s5 + $0x88] sm:$0xff] %vm84, %v331
  %396 = vst.msk [vmem:[%s5 + $0x90] sm:$0xff] %vm84, %v332
  %397 = vst.msk [vmem:[%s5 + $0x98] sm:$0xff] %vm84, %v333
  %398 = vst.msk [vmem:[%s5 + $0xa0] sm:$0xff] %vm84, %v334
  %399 = vst.msk [vmem:[%s5 + $0xa8] sm:$0xff] %vm84, %v335
  %400 = vst.msk [vmem:[%s5 + $0xb0] sm:$0xff] %vm84, %v336
  %401 = vst.msk [vmem:[%s5 + $0xb8] sm:$0xff] %vm84, %v337
  %402 = vst.msk [vmem:[%s5 + $0xc0] sm:$0xff] %vm84, %v338
  %403 = vst.msk [vmem:[%s5 + $0xc8] sm:$0xff] %vm84, %v339
  %404 = vst.msk [vmem:[%s5 + $0xd0] sm:$0xff] %vm84, %v340
  %405 = vst.msk [vmem:[%s5 + $0xd8] sm:$0xff] %vm84, %v341
  %406 = vst.msk [vmem:[%s5 + $0xe0] sm:$0xff] %vm84, %v342
  %407 = vst.msk [vmem:[%s5 + $0xe8] sm:$0xff] %vm84, %v343
  %408 = vst.msk [vmem:[%s5 + $0xf0] sm:$0xff] %vm84, %v344
  %409 = vst.msk [vmem:[%s5 + $0xf8] sm:$0xff] %vm84, %v345
  %410 = vst.msk [vmem:[%s5 + $0x100] sm:$0xff] %vm84, %v346
  %411 = vst.msk [vmem:[%s5 + $0x108] sm:$0xff] %vm84, %v347
  %412 = vst.msk [vmem:[%s5 + $0x110] sm:$0xff] %vm84, %v348
  %413 = vst.msk [vmem:[%s5 + $0x118] sm:$0xff] %vm84, %v349
  %414 = vst.msk [vmem:[%s5 + $0x120] sm:$0xff] %vm84, %v350
  %415 = vst.msk [vmem:[%s5 + $0x128] sm:$0xff] %vm84, %v351
  %416 = vst.msk [vmem:[%s5 + $0x130] sm:$0xff] %vm84, %v352
  %417 = vst.msk [vmem:[%s5 + $0x138] sm:$0xff] %vm84, %v353
  %418 = vst.msk [vmem:[%s5 + $0x140] sm:$0xff] %vm84, %v354
  %419 = vst.msk [vmem:[%s5 + $0x148] sm:$0xff] %vm84, %v355
  %420 = vst.msk [vmem:[%s5 + $0x150] sm:$0xff] %vm84, %v356
  %421 = vst.msk [vmem:[%s5 + $0x158] sm:$0xff] %vm84, %v357
  %422 = vst.msk [vmem:[%s5 + $0x160] sm:$0xff] %vm84, %v358
  %423 = vst.msk [vmem:[%s5 + $0x168] sm:$0xff] %vm84, %v359
  %424 = vst.msk [vmem:[%s5 + $0x170] sm:$0xff] %vm84, %v360
  %425 = vst.msk [vmem:[%s5 + $0x178] sm:$0xff] %vm84, %v361
  %426 = vst.msk [vmem:[%s5 + $0x180] sm:$0xff] %vm84, %v362
  %427 = vst.msk [vmem:[%s5 + $0x188] sm:$0xff] %vm84, %v363
  %428 = vst.msk [vmem:[%s5 + $0x190] sm:$0xff] %vm84, %v364
  %429 = vst.msk [vmem:[%s5 + $0x198] sm:$0xff] %vm84, %v365
  %430 = vst.msk [vmem:[%s5 + $0x1a0] sm:$0xff] %vm84, %v366
  %431 = vst.msk [vmem:[%s5 + $0x1a8] sm:$0xff] %vm84, %v367
  %432 = vst.msk [vmem:[%s5 + $0x1b0] sm:$0xff] %vm84, %v368
  %433 = vst.msk [vmem:[%s5 + $0x1b8] sm:$0xff] %vm84, %v369
  %434 = vst.msk [vmem:[%s5 + $0x1c0] sm:$0xff] %vm84, %v370
  %435 = vst.msk [vmem:[%s5 + $0x1c8] sm:$0xff] %vm84, %v371
  %436 = vst.msk [vmem:[%s5 + $0x1d0] sm:$0xff] %vm84, %v372
  %437 = vst.msk [vmem:[%s5 + $0x1d8] sm:$0xff] %vm84, %v373
  %438 = vst.msk [vmem:[%s5 + $0x1e0] sm:$0xff] %vm84, %v374
  %439 = vst.msk [vmem:[%s5 + $0x1e8] sm:$0xff] %vm84, %v375
  %440 = vst.msk [vmem:[%s5 + $0x1f0] sm:$0xff] %vm84, %v376
  %441 = vst.msk [vmem:[%s5 + $0x1f8] sm:$0xff] %vm84, %v377
  // Predicated region
  $region22: #{tpu_custom_call.1} parent=0 // pred_check
    _
  $region23: #{tpu_custom_call.1} parent=0 // pred_check_branch
    %443 = sbr.rel (0) target = $region25
  $region24: #{tpu_custom_call.1} parent=0 // pred_region
    _
  $region25: #{tpu_custom_call.1} parent=0 // pred_fallthru
    _
  // Predicated region
  $region26: #{tpu_custom_call.1} parent=0 // pred_check
    _
  $region27: #{tpu_custom_call.1} parent=0 // pred_check_branch
    %445 = sbr.rel (0) target = $region29
  $region28: #{tpu_custom_call.1} parent=0 // pred_region
    _
  $region29: #{tpu_custom_call.1} parent=0 // pred_fallthru
    _

</llo_original>
